<compile_context>
chip_gen: v5e
topology: v5e:2x2
jax: 0.10.0
libtpu: 0.0.40
codegen_flags: <defaults>
</compile_context>

<pallas_src>
from functools import lru_cache

import jax
import jax.numpy as jnp
from jax.experimental import pallas as pl
from jax.experimental.pallas import tpu as pltpu


def _round_up(x, m):
    return ((x + m - 1) // m) * m


# ----------------------------------------------------------------------------
# Pallas kernels (the compute hot paths)
# ----------------------------------------------------------------------------
def _linear_kernel(x_ref, w_ref, b_ref, o_ref, acc_ref):
    # x_ref: (tm, tk), w_ref: (tk, tn), b_ref: (1, tn), o_ref: (tm, tn)
    # acc_ref: (tm, tn) f32 scratch, persistent across the K (reduction) axis.
    @pl.when(pl.program_id(2) == 0)
    def _():
        acc_ref[...] = jnp.zeros_like(acc_ref)

    acc_ref[...] += jnp.dot(x_ref[...], w_ref[...],
                            preferred_element_type=jnp.float32)

    @pl.when(pl.program_id(2) == pl.num_programs(2) - 1)
    def _():
        # Bias add in f32, single downcast on the final (lane-dense) store.
        o_ref[...] = (acc_ref[...] + b_ref[...].astype(jnp.float32)).astype(o_ref.dtype)


def _scale_shift_kernel(params_ref, x_ref, o_ref):
    # params_ref: (2,) f32 in SMEM -> [scale, shift]; x_ref/o_ref: (tile_rows, 512)
    scale = params_ref[0]
    shift = params_ref[1]
    o_ref[...] = (x_ref[...].astype(jnp.float32) * scale + shift).astype(o_ref.dtype)


# ----------------------------------------------------------------------------
# Cached pallas_call builders (avoid rebuilding specs on every forward)
# ----------------------------------------------------------------------------
@lru_cache(maxsize=None)
def _build_linear_call(m_pad, k_pad, n_pad, tm, tn, tk, dtype):
    grid = (m_pad // tm, n_pad // tn, k_pad // tk)
    return pl.pallas_call(
        _linear_kernel,
        out_shape=jax.ShapeDtypeStruct((m_pad, n_pad), dtype),
        grid_spec=pltpu.PrefetchScalarGridSpec(
            num_scalar_prefetch=0,
            grid=grid,
            in_specs=[
                pl.BlockSpec((tm, tk), lambda i, j, k: (i, k)),   # x tile
                pl.BlockSpec((tk, tn), lambda i, j, k: (k, j)),   # weight tile
                pl.BlockSpec((1, tn), lambda i, j, k: (0, j)),    # bias tile
            ],
            out_specs=pl.BlockSpec((tm, tn), lambda i, j, k: (i, j)),
            scratch_shapes=[pltpu.VMEM((tm, tn), jnp.float32)],
        ),
        compiler_params=pltpu.CompilerParams(
            # M / N shard across TensorCores (v7x megacore); K is a reduction.
            dimension_semantics=("parallel", "parallel", "arbitrary"),
            vmem_limit_bytes=48 * 1024 * 1024,  # above 16/32 MiB default, < v7x 64 MiB
        ),
    )


@lru_cache(maxsize=None)
def _build_scale_shift_call(rows, lanes, tile_rows, dtype):
    grid = (rows // tile_rows,)
    return pl.pallas_call(
        _scale_shift_kernel,
        out_shape=jax.ShapeDtypeStruct((rows, lanes), dtype),
        grid_spec=pltpu.PrefetchScalarGridSpec(
            num_scalar_prefetch=0,
            grid=grid,
            in_specs=[
                pl.BlockSpec(memory_space=pltpu.MemorySpace.SMEM),      # [scale, shift]
                pl.BlockSpec((tile_rows, lanes), lambda i: (i, 0)),     # x tile
            ],
            out_specs=pl.BlockSpec((tile_rows, lanes), lambda i: (i, 0)),
        ),
        compiler_params=pltpu.CompilerParams(
            dimension_semantics=("parallel",),
            vmem_limit_bytes=48 * 1024 * 1024,
        ),
    )


# ----------------------------------------------------------------------------
# Registered "modules"
# ----------------------------------------------------------------------------
class PallasLinear:
    """nn.Linear equivalent: y = x @ W.T + b, PyTorch-style (out, in) weight."""

    def __init__(self, in_features, out_features, *, key=None, dtype=jnp.float32):
        self.in_features = in_features
        self.out_features = out_features
        key = jax.random.PRNGKey(42) if key is None else key
        kw, kb = jax.random.split(key)
        bound = 1.0 / (in_features ** 0.5)
        # PyTorch-layout parameters (kept for reference / state_dict parity).
        self.weight = jax.random.uniform(
            kw, (out_features, in_features), dtype, -bound, bound)   # (N, K)
        self.bias = jax.random.uniform(kb, (out_features,), dtype, -bound, bound)

        # --- Tile selection (static, per layer) ---------------------------
        # N (lane) axis: pad to a lane-dense multiple of the N tile.
        if out_features <= 128:
            self.tn = 128
        elif out_features <= 512:
            self.tn = 256
        else:
            self.tn = 512
        self.n_pad = _round_up(out_features, self.tn)
        # K (contraction) axis: keep full K resident if modest, else 512-deep
        # reduction tiles (bounds VMEM on v7x, keeps the MXU fed).
        if in_features <= 1024:
            self.tk = in_features
            self.k_pad = in_features
        else:
            self.tk = 512
            self.k_pad = _round_up(in_features, self.tk)

        # Pre-transpose + pre-pad the weight ONCE (no per-call HBM transpose).
        w_t = self.weight.T                                          # (K, N)
        w_t = jnp.pad(w_t, ((0, self.k_pad - in_features),
                            (0, self.n_pad - out_features)))
        self.w_t = w_t                                               # (K_pad, N_pad)
        self.b_pad = jnp.pad(self.bias, (0, self.n_pad - out_features)).reshape(
            1, self.n_pad)

    def __call__(self, x):
        *lead, k = x.shape
        assert k == self.in_features
        x2 = x.reshape(-1, k)                                        # (M, K)
        m = x2.shape[0]

        if self.k_pad != k:
            x2 = jnp.pad(x2, ((0, 0), (0, self.k_pad - k)))

        # Row tile: up to 256 rows; pad the tail instead of shrinking the tile.
        tm = min(256, _round_up(m, 8))
        m_pad = _round_up(m, tm)
        if m_pad != m:
            x2 = jnp.pad(x2, ((0, m_pad - m), (0, 0)))

        call = _build_linear_call(m_pad, self.k_pad, self.n_pad,
                                  tm, self.tn, self.tk, x.dtype)
        y = call(x2, self.w_t, self.b_pad)                           # (M_pad, N_pad)
        y = y[:m, :self.out_features]
        return y.reshape(*lead, self.out_features)


def pallas_scale_shift(x, scale, shift=0.0):
    """Elementwise y = x * scale + shift (scale/shift are runtime scalars)."""
    orig_shape = x.shape
    t = x.size
    lanes = 512                                   # lane-dense (multiple of 128)
    rows_needed = -(-t // lanes)
    tile_rows = min(256, _round_up(rows_needed, 8))
    rows = _round_up(rows_needed, tile_rows)
    t_pad = rows * lanes

    flat = x.reshape(-1)
    if t_pad != t:
        flat = jnp.pad(flat, (0, t_pad - t))
    x2 = flat.reshape(rows, lanes)

    # Runtime SMEM scalars -> no recompilation per (scale, shift) value.
    params = jnp.array([scale, shift], dtype=jnp.float32)

    call = _build_scale_shift_call(rows, lanes, tile_rows, x.dtype)
    y = call(params, x2)
    return y.reshape(-1)[:t].reshape(orig_shape)


# ----------------------------------------------------------------------------
# The _ModuleGroup dispatcher (semantics identical to the PyTorch version)
# ----------------------------------------------------------------------------
class ModuleGroup:
    MODULES = {
        "linear": PallasLinear,             # class    -> instantiated with args
        "scale_shift": pallas_scale_shift,  # callable -> args/kwargs stored
    }

    def __init__(self, name, *args, **kwargs):
        m = self.__class__.MODULES[name]
        if isinstance(m, type):
            self.module = m(*args, **kwargs)
            self.stored_args = None
            self.stored_kwargs = None
        else:
            self.module = m
            self.stored_args, self.stored_kwargs = (args, kwargs)

    def __call__(self, *args, **kwargs):
        if self.stored_args is not None:
            return self.module(*args, *self.stored_args, **kwargs,
                               **self.stored_kwargs)
        return self.module(*args, **kwargs)

    forward = __call__


# ----------------------------------------------------------------------------
if __name__ == "__main__":
    key = jax.random.PRNGKey(0)
    batch, seq, hidden = 2, 8, 32
    x = jax.random.normal(key, (batch, seq, hidden), dtype=jnp.float32)

    # Branch (a): class entry — instantiated with (*args), forward delegates.
    lin_group = ModuleGroup("linear", hidden, hidden)
    y_lin = lin_group(x)
    jax.block_until_ready(y_lin)
    ref_lin = x @ lin_group.module.weight.T + lin_group.module.bias
    assert y_lin.shape == (batch, seq, hidden)
    assert jnp.allclose(y_lin, ref_lin, atol=1e-5, rtol=1e-5)

    # Branch (b): callable entry — stored args/kwargs appended at call time.
    ss_group = ModuleGroup("scale_shift", 2.0, shift=0.5)
    y_ss = ss_group(x)
    jax.block_until_ready(y_ss)
    assert jnp.allclose(y_ss, x * 2.0 + 0.5, atol=1e-6)

    print("KERNEL_OK")
</pallas_src>

<mosaic_0001>
module attributes {stable_mosaic.version = 11 : i64} {
  func.func @_linear_kernel(%arg0: i32, %arg1: i32, %arg2: i32, %arg3: memref<16x32xf32, #tpu.memory_space<vmem>>, %arg4: memref<32x128xf32, #tpu.memory_space<vmem>>, %arg5: memref<1x128xf32, #tpu.memory_space<vmem>>, %arg6: memref<16x128xf32, #tpu.memory_space<vmem>>, %arg7: memref<16x128xf32, #tpu.memory_space<vmem>>) attributes {dimension_semantics = [#tpu.dimension_semantics<parallel>, #tpu.dimension_semantics<parallel>, #tpu.dimension_semantics<arbitrary>], iteration_bounds = array<i64: 1, 1, 1>, scalar_prefetch = 0 : i64, scratch_operands = 1 : i64, tpu.core_type = #tpu.core_type<tc>, window_params = [{transform_indices = @transform_0, window_bounds = array<i64: 16, 32>}, {transform_indices = @transform_1, window_bounds = array<i64: 32, 128>}, {transform_indices = @transform_2, window_bounds = array<i64: 1, 128>}, {transform_indices = @transform_3, window_bounds = array<i64: 16, 128>}]} {
    %c0_i32 = arith.constant 0 : i32
    %0 = arith.cmpi eq, %arg2, %c0_i32 : i32
    %1 = arith.extui %0 : i1 to i32
    %c0_i32_0 = arith.constant 0 : i32
    %2 = arith.cmpi ne, %1, %c0_i32_0 : i32
    scf.if %2 {
      %cst_10 = arith.constant 0.000000e+00 : f32
      %12 = vector.broadcast %cst_10 : f32 to vector<16x128xf32>
      %c0_11 = arith.constant 0 : index
      %c0_12 = arith.constant 0 : index
      %13 = vector.load %arg7[%c0_11, %c0_12] : memref<16x128xf32, #tpu.memory_space<vmem>>, vector<16x128xf32>
      tpu.vector_store %arg7[%c0_11, %c0_12], %12 {strides = array<i32>} : memref<16x128xf32, #tpu.memory_space<vmem>>, vector<16x128xf32>,
    } else {
    }
    %c0 = arith.constant 0 : index
    %c0_1 = arith.constant 0 : index
    %3 = vector.load %arg7[%c0, %c0_1] : memref<16x128xf32, #tpu.memory_space<vmem>>, vector<16x128xf32>
    %c0_2 = arith.constant 0 : index
    %c0_3 = arith.constant 0 : index
    %4 = vector.load %arg3[%c0_2, %c0_3] : memref<16x32xf32, #tpu.memory_space<vmem>>, vector<16x32xf32>
    %c0_4 = arith.constant 0 : index
    %c0_5 = arith.constant 0 : index
    %5 = vector.load %arg4[%c0_4, %c0_5] : memref<32x128xf32, #tpu.memory_space<vmem>>, vector<32x128xf32>
    %cst = arith.constant dense<0.000000e+00> : vector<16x128xf32>
    %6 = tpu.matmul %4, %5, %cst {dimension_numbers = #tpu.dot_dimension_numbers<[1], [0], [0], [1], [0, 0, 1, 1], [], []>} : vector<16x32xf32>, vector<32x128xf32>, vector<16x128xf32> -> vector<16x128xf32>
    %7 = arith.addf %3, %6 : vector<16x128xf32>
    %c0_6 = arith.constant 0 : index
    %c0_7 = arith.constant 0 : index
    %8 = vector.load %arg7[%c0_6, %c0_7] : memref<16x128xf32, #tpu.memory_space<vmem>>, vector<16x128xf32>
    tpu.vector_store %arg7[%c0_6, %c0_7], %7 {strides = array<i32>} : memref<16x128xf32, #tpu.memory_space<vmem>>, vector<16x128xf32>,
    %c0_i32_8 = arith.constant 0 : i32
    %9 = arith.cmpi eq, %arg2, %c0_i32_8 : i32
    %10 = arith.extui %9 : i1 to i32
    %c0_i32_9 = arith.constant 0 : i32
    %11 = arith.cmpi ne, %10, %c0_i32_9 : i32
    scf.if %11 {
      %c0_10 = arith.constant 0 : index
      %c0_11 = arith.constant 0 : index
      %12 = vector.load %arg7[%c0_10, %c0_11] : memref<16x128xf32, #tpu.memory_space<vmem>>, vector<16x128xf32>
      %c0_12 = arith.constant 0 : index
      %c0_13 = arith.constant 0 : index
      %13 = vector.load %arg5[%c0_12, %c0_13] : memref<1x128xf32, #tpu.memory_space<vmem>>, vector<1x128xf32>
      %14 = vector.broadcast %13 : vector<1x128xf32> to vector<16x128xf32>
      %15 = arith.addf %12, %14 : vector<16x128xf32>
      %c0_14 = arith.constant 0 : index
      %c0_15 = arith.constant 0 : index
      %16 = vector.load %arg6[%c0_14, %c0_15] : memref<16x128xf32, #tpu.memory_space<vmem>>, vector<16x128xf32>
      tpu.vector_store %arg6[%c0_14, %c0_15], %15 {strides = array<i32>} : memref<16x128xf32, #tpu.memory_space<vmem>>, vector<16x128xf32>,
    } else {
    }
    return
  }
  func.func @transform_0(%arg0: i32, %arg1: i32, %arg2: i32) -> (i32, i32) {
    %c0_i32 = arith.constant 0 : i32
    return %arg0, %arg2 : i32, i32
  }
  func.func @transform_1(%arg0: i32, %arg1: i32, %arg2: i32) -> (i32, i32) {
    %c0_i32 = arith.constant 0 : i32
    return %arg2, %arg1 : i32, i32
  }
  func.func @transform_2(%arg0: i32, %arg1: i32, %arg2: i32) -> (i32, i32) {
    %c0_i32 = arith.constant 0 : i32
    %c0_i32_0 = arith.constant 0 : i32
    return %c0_i32, %arg1 : i32, i32
  }
  func.func @transform_3(%arg0: i32, %arg1: i32, %arg2: i32) -> (i32, i32) {
    %c0_i32 = arith.constant 0 : i32
    return %arg0, %arg1 : i32, i32
  }
}

</mosaic_0001>

<llo_original>
// kernel: tpu_custom_call.1
$region0: #{tpu_custom_call.1}
  #allocation0 [shape = 'u32[]', space=smem, size = 0x4, offset = 0x4, fixed_abs, tag = 'smem constant byte address 0x4 - core index']
  #allocation1 [shape = 'u32[72,128]{1,0:T(1,128)}', space=vmem, size = 0x9000, scoped, tag = 'internal scratch']
  #allocation2 [shape = 'f32[16,128]{1,0:T(8,128)}', space=vmem, size = 0x2000, scoped, tag = 'scratch operand']
  %s0 = inlined_call_operand.hbm [shape: f32[16,32], index: 0, kind: input, shape index: {}]
  %s1 = inlined_call_operand.hbm [shape: f32[32,128], index: 1, kind: input, shape index: {}]
  %s2 = inlined_call_operand.vmem [shape: f32[1,128], index: 2, kind: input, shape index: {}]
  %s3 = inlined_call_operand.hbm [shape: f32[16,128], index: 3, kind: output, shape index: {}]
  %s4 = sld [smem:[#allocation0]]
  $region38: #{tpu_custom_call.1} parent=0
    _
  %s6 = ssub.s32 1, %s4
  %s7 = scalar_select 0, %s6, %s4
  $region1: #{tpu_custom_call.1} parent=0
    #allocation3 [shape = 'u8[8192]{0}', space=vmem, size = 0x2000, scoped, tag = 'input window, operand 0, single buffered']
    #allocation4 [shape = 's32[1]{0}', space=sflag, size = 0x4, scoped, tag = 'scoped memory for tpu_custom_call.1']
    #allocation5 [shape = 's32[1]{0}', space=sflag, size = 0x4, scoped, tag = 'scoped memory for tpu_custom_call.1']
    #allocation6 [shape = 'u8[16384]{0}', space=vmem, size = 0x4000, scoped, tag = 'input window, operand 1, single buffered']
    #allocation7 [shape = 's32[1]{0}', space=sflag, size = 0x4, scoped, tag = 'scoped memory for tpu_custom_call.1']
    #allocation8 [shape = 'u8[8192]{0}', space=vmem, size = 0x2000, scoped, tag = 'output window, operand 0, single buffered']
    %8 = vsyncpa [#allocation4], 0
    %9 = vsyncpa [#allocation7], 0
    %10 = vsyncpa [#allocation5], 0
    // Predicated region
    $region2: #{tpu_custom_call.1} parent=1 // pred_check
      _
    $region3: #{tpu_custom_call.1} parent=1 // pred_check_branch
      %12 = sbr.rel (0) target = $region5
    $region4: #{tpu_custom_call.1} parent=1 // pred_region
      %14 = vsyncadd [#allocation4], 0
      %s15 = sshll.u32 %s0, 4
      %s16 = int_to_ptr.hbm [resolvable:$true] %s15
      %s17 = sshll.u32 [#allocation3], 4
      %s18 = int_to_ptr.vmem [resolvable:$true] %s17
      %23 = dma.hbm_to_vmem [thread:$0]  %s16, 256, %s18, [#allocation4], 128, 128, 8
    $region5: #{tpu_custom_call.1} parent=1 // pred_fallthru
      _
    // Predicated region
    $region6: #{tpu_custom_call.1} parent=1 // pred_check
      _
    $region7: #{tpu_custom_call.1} parent=1 // pred_check_branch
      %25 = sbr.rel (0) target = $region9
    $region8: #{tpu_custom_call.1} parent=1 // pred_region
      %27 = vsyncadd [#allocation7], 0
      %s28 = sshll.u32 %s1, 4
      %s29 = int_to_ptr.hbm [resolvable:$true] %s28
      %s30 = sshll.u32 [#allocation6], 4
      %s31 = int_to_ptr.vmem [resolvable:$true] %s30
      %36 = dma.hbm_to_vmem [thread:$0]  %s29, 512, %s31, [#allocation7], 128, 128, 8
    $region9: #{tpu_custom_call.1} parent=1 // pred_fallthru
      _
    // Predicated region
    $region10: #{tpu_custom_call.1} parent=1 // pred_check
      _
    $region11: #{tpu_custom_call.1} parent=1 // pred_check_branch
      %38 = sbr.rel (0) target = $region13
    $region12: #{tpu_custom_call.1} parent=1 // pred_region
      _
    $region13: #{tpu_custom_call.1} parent=1 // pred_fallthru
      _
    // Predicated region
    $region14: #{tpu_custom_call.1} parent=1 // pred_check
      _
    $region15: #{tpu_custom_call.1} parent=1 // pred_check_branch
      %40 = sbr.rel (0) target = $region17
    $region16: #{tpu_custom_call.1} parent=1 // pred_region
      %42 = dma.done [#allocation4], 256
    $region17: #{tpu_custom_call.1} parent=1 // pred_fallthru
      _
    // Predicated region
    $region18: #{tpu_custom_call.1} parent=1 // pred_check
      _
    $region19: #{tpu_custom_call.1} parent=1 // pred_check_branch
      %44 = sbr.rel (0) target = $region21
    $region20: #{tpu_custom_call.1} parent=1 // pred_region
      %46 = dma.done [#allocation7], 512
    $region21: #{tpu_custom_call.1} parent=1 // pred_fallthru
      _
    %p47 = scmp.eq.s32.totalorder 0, 0
    // Predicated region
    $region22: #{tpu_custom_call.1} parent=1 // pred_check
      %p48 = pneg %p47
    $region23: #{tpu_custom_call.1} parent=1 // pred_check_branch
      %50 = sbr.rel (%p48) target = $region25
    $region24: #{tpu_custom_call.1} parent=1 // pred_region
      %51 = vst [vmem:[#allocation2] sm:$0xff] 0.0
      %52 = vst [vmem:[#allocation2 + $0x8] sm:$0xff] 0.0
    $region25: #{tpu_custom_call.1} parent=1 // pred_fallthru
      _
    %v53 = vld [vmem:[#allocation2] sm:$0xff]
    %v54 = vld [vmem:[#allocation2 + $0x8] sm:$0xff]
    %v55 = vld [vmem:[#allocation3] sm:$0xff]
    %v56 = vld [vmem:[#allocation3 + $0x8] sm:$0xff]
    %v57 = vld [vmem:[#allocation6] sm:$0xff]
    %v58 = vld [vmem:[#allocation6 + $0x8] sm:$0xff]
    %v59 = vld [vmem:[#allocation6 + $0x10] sm:$0xff]
    %v60 = vld [vmem:[#allocation6 + $0x18] sm:$0xff]
    %vm61 = vcmask 261120
    %v63 = vsel %vm61, %v55, 0
    %v66 = vsel %vm61, %v56, 0
    %68 = vmatpush.msra.mxu0 0.0
    %69 = vmatpush.msra.mxu0 0.0
    %70 = vmatpush.msra.mxu0 0.0
    %71 = vmatpush.msra.mxu0 0.0
    %72 = vmatpush.msra.mxu0 0.0
    %73 = vmatpush.msra.mxu0 0.0
    %74 = vmatpush.msra.mxu0 0.0
    %75 = vmatpush.msra.mxu0 0.0
    %76 = vmatpush.msra.mxu0 0.0
    %77 = vmatpush.msra.mxu0 0.0
    %78 = vmatpush.msra.mxu0 0.0
    %79 = vmatpush.msra.mxu0 0.0
    %80 = vmatpush.msra.mxu0 %v60
    %81 = vmatpush.msra.mxu0 %v59
    %82 = vmatpush.msra.mxu0 %v58
    %83 = vmatpush.msra.mxu0 %v57
    %84 = vmatmul.f32.gmra.mxu0 %v63
    %v85 = vpop.f32.mrf.mxu0
    %v86 = vadd.f32 0.0, %v85
    %87 = vmatmul.f32.gmra.mxu0 %v66
    %v88 = vpop.f32.mrf.mxu0
    %v89 = vadd.f32 0.0, %v88
    %90 = vdwg.mxu0
    %v91 = vadd.f32 %v53, %v86
    %v92 = vadd.f32 %v54, %v89
    %93 = vst [vmem:[#allocation2] sm:$0xff] %v91
    %94 = vst [vmem:[#allocation2 + $0x8] sm:$0xff] %v92
    // Predicated region
    $region26: #{tpu_custom_call.1} parent=1 // pred_check
      %p95 = pneg %p47
    $region27: #{tpu_custom_call.1} parent=1 // pred_check_branch
      %97 = sbr.rel (%p95) target = $region29
    $region28: #{tpu_custom_call.1} parent=1 // pred_region
      %v98 = vld [vmem:[#allocation2] sm:$0xff]
      %v99 = vld [vmem:[#allocation2 + $0x8] sm:$0xff]
      %v100 = vld [vmem:[%s2] sm:$0x1]
      %v102 = vperm.slane %v100, 0
      %v104 = vadd.f32 %v98, %v102
      %v105 = vadd.f32 %v99, %v102
      %106 = vst [vmem:[#allocation8] sm:$0xff] %v104
      %107 = vst [vmem:[#allocation8 + $0x8] sm:$0xff] %v105
    $region29: #{tpu_custom_call.1} parent=1 // pred_fallthru
      _
    // Predicated region
    $region30: #{tpu_custom_call.1} parent=1 // pred_check
      _
    $region31: #{tpu_custom_call.1} parent=1 // pred_check_branch
      %109 = sbr.rel (0) target = $region33
    $region32: #{tpu_custom_call.1} parent=1 // pred_region
      %111 = vsyncadd [#allocation5], 0
      %s112 = sshll.u32 [#allocation8], 4
      %s113 = int_to_ptr.vmem [resolvable:$true] %s112
      %s114 = sshll.u32 %s3, 4
      %s115 = int_to_ptr.hbm [resolvable:$true] %s114
      %120 = dma.vmem_to_hbm [thread:$0]  %s113, 256, %s115, [#allocation5], 128, 128, 8
    $region33: #{tpu_custom_call.1} parent=1 // pred_fallthru
      _
    // Predicated region
    $region34: #{tpu_custom_call.1} parent=1 // pred_check
      _
    $region35: #{tpu_custom_call.1} parent=1 // pred_check_branch
      %122 = sbr.rel (0) target = $region37
    $region36: #{tpu_custom_call.1} parent=1 // pred_region
      %124 = dma.done [#allocation5], 256
    $region37: #{tpu_custom_call.1} parent=1 // pred_fallthru
      _
    %125 = vsyncpa [#allocation4], 1
    %126 = vsyncpa [#allocation7], 1
    %127 = vsyncpa [#allocation5], 1

</llo_original>
